<compile_context>
chip_gen: v7x
topology: tpu7x:2x2x1
jax: 0.10.0
libtpu: 0.0.40
codegen_flags: <defaults>
</compile_context>

<pallas_src>
import functools
import math

import jax
import jax.numpy as jnp
from jax.experimental import pallas as pl
from jax.experimental.pallas import tpu as pltpu

LANES = 128
SUBLANES = 8
TARGET_TILE_ROWS = 2048  # 2048*128*4B = 1 MiB per f32 input block

_DB_SCALE = 20.0 / math.log(10.0)  # 20*log10(x) == _DB_SCALE * ln(x)


def _db_mse_kernel(pred_ref, tgt_ref, loss_ref, acc_ref, *,
                   n_elements, n_rows, tile_rows, needs_mask):
    i = pl.program_id(0)

    @pl.when(i == 0)
    def _():
        acc_ref[...] = jnp.zeros_like(acc_ref)

    eps = jnp.float32(1e-10)
    o = pred_ref[...].astype(jnp.float32)
    t = tgt_ref[...].astype(jnp.float32)
    # 20*log10(|o|+eps) - 20*log10(|t|+eps) == (20/ln10)*(ln(|o|+eps)-ln(|t|+eps))
    diff = jnp.float32(_DB_SCALE) * (
        jnp.log(jnp.abs(o) + eps) - jnp.log(jnp.abs(t) + eps))
    sq = diff * diff

    if needs_mask:
        # Tail tile: zero out rows past the real extent of the (rows, 128)
        # slab *before* accumulating (out-of-bounds rows hold garbage).
        row_ids = (i * tile_rows
                   + jax.lax.broadcasted_iota(jnp.int32, (tile_rows, LANES), 0))
        sq = jnp.where(row_ids < n_rows, sq, jnp.float32(0.0))

    # Per-vreg partial sums: (tile_rows,128) -> (tile_rows/8, 8, 128), then add
    # along the leading axis.  Pure VPU vreg adds, no cross-lane work per step.
    acc_ref[...] += jnp.sum(
        sq.reshape(tile_rows // SUBLANES, SUBLANES, LANES), axis=0)

    @pl.when(i == pl.num_programs(0) - 1)
    def _():
        loss_ref[0, 0] = jnp.sum(acc_ref[...]) / jnp.float32(n_elements)


def decibel_loss(output, target):
    """Pallas implementation of DecibelLoss.forward(output, target)."""
    assert output.shape == target.shape
    n_elements = output.size

    # Flatten in native dtype (no wrapper upcast copy); the kernel upcasts per
    # tile on the VPU for free.
    flat_o = output.reshape(-1)
    flat_t = target.reshape(-1)

    # Lane-dense (rows, 128) slab.  Only pad when n % 128 != 0; padded
    # positions are zero in BOTH tensors, so their dB difference is exactly 0.
    padded = pl.cdiv(n_elements, LANES) * LANES
    pad = padded - n_elements
    if pad:
        flat_o = jnp.pad(flat_o, (0, pad))
        flat_t = jnp.pad(flat_t, (0, pad))
    rows = padded // LANES
    o2d = flat_o.reshape(rows, LANES)
    t2d = flat_t.reshape(rows, LANES)

    # Largest row tile up to TARGET_TILE_ROWS, rounded to a sublane multiple.
    tile_rows = min(TARGET_TILE_ROWS,
                    ((rows + SUBLANES - 1) // SUBLANES) * SUBLANES)
    num_steps = pl.cdiv(rows, tile_rows)
    needs_mask = (rows % tile_rows) != 0

    kernel = functools.partial(
        _db_mse_kernel,
        n_elements=n_elements,
        n_rows=rows,
        tile_rows=tile_rows,
        needs_mask=needs_mask,
    )

    loss = pl.pallas_call(
        kernel,
        out_shape=jax.ShapeDtypeStruct((1, 1), jnp.float32),
        grid_spec=pltpu.PrefetchScalarGridSpec(
            num_scalar_prefetch=0,
            grid=(num_steps,),
            in_specs=[
                pl.BlockSpec((tile_rows, LANES), lambda i: (i, 0)),
                pl.BlockSpec((tile_rows, LANES), lambda i: (i, 0)),
            ],
            out_specs=pl.BlockSpec(
                (1, 1), lambda i: (0, 0), memory_space=pltpu.SMEM
            ),
            scratch_shapes=[pltpu.VMEM((SUBLANES, LANES), jnp.float32)],
        ),
        compiler_params=pltpu.CompilerParams(
            dimension_semantics=("arbitrary",),
            # 2 inputs x 2 pipeline buffers x <=1 MiB block + 4 KiB scratch:
            # well inside the budget on every generation (incl. v7x 64 MiB/TC).
            vmem_limit_bytes=32 * 1024 * 1024,
        ),
    )(o2d, t2d)

    return loss[0, 0]


def _reference(output, target):
    eps = 1e-10
    o_db = 20.0 * jnp.log10(jnp.abs(output) + eps)
    t_db = 20.0 * jnp.log10(jnp.abs(target) + eps)
    return jnp.mean((o_db - t_db) ** 2)


if __name__ == "__main__":
    key = jax.random.PRNGKey(0)
    k1, k2 = jax.random.split(key)
    # Small NCHW-like shapes consistent with a typical conv output / target.
    shape = (2, 4, 16, 16)
    output = jax.random.normal(k1, shape, dtype=jnp.float32)
    target = jax.random.normal(k2, shape, dtype=jnp.float32)

    loss = decibel_loss(output, target)
    jax.block_until_ready(loss)

    ref = _reference(output, target)
    assert jnp.allclose(loss, ref, rtol=1e-5, atol=1e-5), (loss, ref)
    print("KERNEL_OK")
</pallas_src>

<mosaic_0001>
module attributes {stable_mosaic.version = 11 : i64} {
  func.func @_db_mse_kernel(%arg0: i32, %arg1: memref<16x128xf32, #tpu.memory_space<vmem>>, %arg2: memref<16x128xf32, #tpu.memory_space<vmem>>, %arg3: memref<1x1xf32, #tpu.memory_space<smem>>, %arg4: memref<8x128xf32, #tpu.memory_space<vmem>>) attributes {dimension_semantics = [#tpu.dimension_semantics<arbitrary>], iteration_bounds = array<i64: 1>, scalar_prefetch = 0 : i64, scratch_operands = 1 : i64, tpu.core_type = #tpu.core_type<tc>, window_params = [{transform_indices = @transform_0, window_bounds = array<i64: 16, 128>}, {transform_indices = @transform_1, window_bounds = array<i64: 16, 128>}, {transform_indices = @transform_2, window_bounds = array<i64: 1, 1>}]} {
    %c0_i32 = arith.constant 0 : i32
    %0 = arith.cmpi eq, %arg0, %c0_i32 : i32
    %1 = arith.extui %0 : i1 to i32
    %c0_i32_0 = arith.constant 0 : i32
    %2 = arith.cmpi ne, %1, %c0_i32_0 : i32
    scf.if %2 {
      %cst_13 = arith.constant 0.000000e+00 : f32
      %25 = vector.broadcast %cst_13 : f32 to vector<8x128xf32>
      %c0_14 = arith.constant 0 : index
      %c0_15 = arith.constant 0 : index
      %26 = vector.load %arg4[%c0_14, %c0_15] : memref<8x128xf32, #tpu.memory_space<vmem>>, vector<8x128xf32>
      tpu.vector_store %arg4[%c0_14, %c0_15], %25 {strides = array<i32>} : memref<8x128xf32, #tpu.memory_space<vmem>>, vector<8x128xf32>,
    } else {
    }
    %c0 = arith.constant 0 : index
    %c0_1 = arith.constant 0 : index
    %3 = vector.load %arg1[%c0, %c0_1] : memref<16x128xf32, #tpu.memory_space<vmem>>, vector<16x128xf32>
    %c0_2 = arith.constant 0 : index
    %c0_3 = arith.constant 0 : index
    %4 = vector.load %arg2[%c0_2, %c0_3] : memref<16x128xf32, #tpu.memory_space<vmem>>, vector<16x128xf32>
    %5 = math.absf %3 : vector<16x128xf32>
    %cst = arith.constant 1.000000e-10 : f32
    %6 = vector.broadcast %cst : f32 to vector<16x128xf32>
    %7 = arith.addf %5, %6 : vector<16x128xf32>
    %8 = math.log %7 : vector<16x128xf32>
    %9 = math.absf %4 : vector<16x128xf32>
    %cst_4 = arith.constant 1.000000e-10 : f32
    %10 = vector.broadcast %cst_4 : f32 to vector<16x128xf32>
    %11 = arith.addf %9, %10 : vector<16x128xf32>
    %12 = math.log %11 : vector<16x128xf32>
    %13 = arith.subf %8, %12 : vector<16x128xf32>
    %cst_5 = arith.constant 8.68588924 : f32
    %14 = vector.broadcast %cst_5 : f32 to vector<16x128xf32>
    %15 = arith.mulf %14, %13 : vector<16x128xf32>
    %16 = arith.mulf %15, %15 : vector<16x128xf32>
    %c0_6 = arith.constant 0 : index
    %c0_7 = arith.constant 0 : index
    %17 = vector.load %arg4[%c0_6, %c0_7] : memref<8x128xf32, #tpu.memory_space<vmem>>, vector<8x128xf32>
    %18 = vector.shape_cast %16 : vector<16x128xf32> to vector<2x8x128xf32>
    %cst_8 = arith.constant dense<0.000000e+00> : vector<8x128xf32>
    %19 = vector.multi_reduction <add>, %18, %cst_8 [0] : vector<2x8x128xf32> to vector<8x128xf32>
    %20 = arith.addf %17, %19 : vector<8x128xf32>
    %c0_9 = arith.constant 0 : index
    %c0_10 = arith.constant 0 : index
    %21 = vector.load %arg4[%c0_9, %c0_10] : memref<8x128xf32, #tpu.memory_space<vmem>>, vector<8x128xf32>
    tpu.vector_store %arg4[%c0_9, %c0_10], %20 {strides = array<i32>} : memref<8x128xf32, #tpu.memory_space<vmem>>, vector<8x128xf32>,
    %c0_i32_11 = arith.constant 0 : i32
    %22 = arith.cmpi eq, %arg0, %c0_i32_11 : i32
    %23 = arith.extui %22 : i1 to i32
    %c0_i32_12 = arith.constant 0 : i32
    %24 = arith.cmpi ne, %23, %c0_i32_12 : i32
    scf.if %24 {
      %c0_13 = arith.constant 0 : index
      %c0_14 = arith.constant 0 : index
      %25 = vector.load %arg4[%c0_13, %c0_14] : memref<8x128xf32, #tpu.memory_space<vmem>>, vector<8x128xf32>
      %26 = vector.shape_cast %25 : vector<8x128xf32> to vector<1x8x128xf32>
      %cst_15 = arith.constant dense<0.000000e+00> : vector<1xf32>
      %27 = vector.multi_reduction <add>, %26, %cst_15 [1, 2] : vector<1x8x128xf32> to vector<1xf32>
      %28 = vector.shape_cast %27 : vector<1xf32> to vector<1x1x1xf32>
      %29 = vector.extract %28[0, 0, 0] : f32 from vector<1x1x1xf32>
      %cst_16 = arith.constant 2.048000e+03 : f32
      %30 = arith.divf %29, %cst_16 : f32
      %c0_17 = arith.constant 0 : index
      %c0_18 = arith.constant 0 : index
      %31 = memref.load %arg3[%c0_17, %c0_18] : memref<1x1xf32, #tpu.memory_space<smem>>
      memref.store %30, %arg3[%c0_17, %c0_18] : memref<1x1xf32, #tpu.memory_space<smem>>
    } else {
    }
    return
  }
  func.func @transform_0(%arg0: i32) -> (i32, i32) {
    %c0_i32 = arith.constant 0 : i32
    %c0_i32_0 = arith.constant 0 : i32
    return %arg0, %c0_i32 : i32, i32
  }
  func.func @transform_1(%arg0: i32) -> (i32, i32) {
    %c0_i32 = arith.constant 0 : i32
    %c0_i32_0 = arith.constant 0 : i32
    return %arg0, %c0_i32 : i32, i32
  }
  func.func @transform_2(%arg0: i32) -> (i32, i32) {
    %c0_i32 = arith.constant 0 : i32
    %c0_i32_0 = arith.constant 0 : i32
    %c0_i32_1 = arith.constant 0 : i32
    return %c0_i32, %c0_i32_0 : i32, i32
  }
}

</mosaic_0001>

<llo_original>
// kernel: tpu_custom_call.1
$region0: #{tpu_custom_call.1}
  #allocation0 [shape = 'u32[]', space=smem, size = 0x4, offset = 0x4, fixed_abs, tag = 'smem constant byte address 0x4 - core index']
  #allocation1 [shape = 'u32[144,128]{1,0:T(1,128)}', space=vmem, size = 0x12000, scoped, tag = 'internal scratch']
  #allocation2 [shape = 'f32[8,128]{1,0:T(8,128)}', space=vmem, size = 0x1000, scoped, tag = 'scratch operand']
  %s0 = inlined_call_operand.hbm [shape: f32[16,128], index: 0, kind: input, shape index: {}]
  %s1 = inlined_call_operand.hbm [shape: f32[16,128], index: 1, kind: input, shape index: {}]
  %s2 = inlined_call_operand.hbm [shape: f32[1,1], index: 2, kind: output, shape index: {}]
  %s3 = sld [smem:[#allocation0]]
  $region34: #{tpu_custom_call.1} parent=0
    _
  %s5 = ssub.s32 1, %s3
  %s6 = scalar_select 0, %s5, %s3
  $region1: #{tpu_custom_call.1} parent=0
    #allocation3 [shape = 'u8[8192]{0}', space=vmem, size = 0x2000, scoped, tag = 'input window, operand 0, single buffered']
    #allocation4 [shape = 's32[1]{0}', space=sflag, size = 0x4, scoped, tag = 'scoped memory for tpu_custom_call.1']
    #allocation5 [shape = 's32[1]{0}', space=sflag, size = 0x4, scoped, tag = 'scoped memory for tpu_custom_call.1']
    #allocation6 [shape = 'u8[8192]{0}', space=vmem, size = 0x2000, scoped, tag = 'input window, operand 1, single buffered']
    #allocation7 [shape = 's32[1]{0}', space=sflag, size = 0x4, scoped, tag = 'scoped memory for tpu_custom_call.1']
    #allocation8 [shape = 'u8[512]{0}', space=smem, size = 0x200, scoped, tag = 'output window, operand 0, single buffered']
    %7 = vsyncpa [#allocation4], 0
    %8 = vsyncpa [#allocation7], 0
    %9 = vsyncpa [#allocation5], 0
    // Predicated region
    $region2: #{tpu_custom_call.1} parent=1 // pred_check
      _
    $region3: #{tpu_custom_call.1} parent=1 // pred_check_branch
      %11 = sbr.rel (0) target = $region5
    $region4: #{tpu_custom_call.1} parent=1 // pred_region
      %s13 = ssub.s32 256, 256
      %14 = vsyncadd [#allocation4], %s13
      %s15 = sshll.u32 [#allocation3], 4
      %s16 = int_to_ptr.vmem [resolvable:$true] %s15
      %21 = dma.hbm_to_vmem [thread:$0]  %s0, 256, %s16, [#allocation4], 128, 128, 8
    $region5: #{tpu_custom_call.1} parent=1 // pred_fallthru
      _
    // Predicated region
    $region6: #{tpu_custom_call.1} parent=1 // pred_check
      _
    $region7: #{tpu_custom_call.1} parent=1 // pred_check_branch
      %23 = sbr.rel (0) target = $region9
    $region8: #{tpu_custom_call.1} parent=1 // pred_region
      %s25 = ssub.s32 256, 256
      %26 = vsyncadd [#allocation7], %s25
      %s27 = sshll.u32 [#allocation6], 4
      %s28 = int_to_ptr.vmem [resolvable:$true] %s27
      %33 = dma.hbm_to_vmem [thread:$0]  %s1, 256, %s28, [#allocation7], 128, 128, 8
    $region9: #{tpu_custom_call.1} parent=1 // pred_fallthru
      _
    // Predicated region
    $region10: #{tpu_custom_call.1} parent=1 // pred_check
      _
    $region11: #{tpu_custom_call.1} parent=1 // pred_check_branch
      %35 = sbr.rel (0) target = $region13
    $region12: #{tpu_custom_call.1} parent=1 // pred_region
      %36 = dma.done [#allocation4], 256
    $region13: #{tpu_custom_call.1} parent=1 // pred_fallthru
      _
    // Predicated region
    $region14: #{tpu_custom_call.1} parent=1 // pred_check
      _
    $region15: #{tpu_custom_call.1} parent=1 // pred_check_branch
      %38 = sbr.rel (0) target = $region17
    $region16: #{tpu_custom_call.1} parent=1 // pred_region
      %39 = dma.done [#allocation7], 256
    $region17: #{tpu_custom_call.1} parent=1 // pred_fallthru
      _
    %p40 = scmp.eq.s32.totalorder 0, 0
    // Predicated region
    $region18: #{tpu_custom_call.1} parent=1 // pred_check
      %p41 = pneg %p40
    $region19: #{tpu_custom_call.1} parent=1 // pred_check_branch
      %43 = sbr.rel (%p41) target = $region21
    $region20: #{tpu_custom_call.1} parent=1 // pred_region
      %44 = vst [vmem:[#allocation2] sm:$0xff] 0.0
    $region21: #{tpu_custom_call.1} parent=1 // pred_fallthru
      _
    %v45 = vld [vmem:[#allocation3] sm:$0xff]
    %v46 = vld [vmem:[#allocation3 + $0x8] sm:$0xff]
    %v47 = vld [vmem:[#allocation6] sm:$0xff]
    %v48 = vld [vmem:[#allocation6 + $0x8] sm:$0xff]
    %v49 = vand.u32 2147483647, %v45
    %v50 = vand.u32 2147483647, %v46
    %v51 = vadd.f32 %v49, 1e-10
    %v52 = vadd.f32 %v50, 1e-10
    %v53 = vlog2.pop %v51
    %v54 = vmul.f32 %v53, 0.6931472
    %v55 = vlog2.pop %v52
    %v56 = vmul.f32 %v55, 0.6931472
    %v57 = vand.u32 2147483647, %v47
    %v58 = vand.u32 2147483647, %v48
    %v59 = vadd.f32 %v57, 1e-10
    %v60 = vadd.f32 %v58, 1e-10
    %v61 = vlog2.pop %v59
    %v62 = vmul.f32 %v61, 0.6931472
    %v63 = vlog2.pop %v60
    %v64 = vmul.f32 %v63, 0.6931472
    %v65 = vsub.f32 %v54, %v62
    %v66 = vsub.f32 %v56, %v64
    %v67 = vmul.f32 %v65, 8.685889
    %v68 = vmul.f32 %v66, 8.685889
    %v69 = vmul.f32 %v67, %v67
    %v70 = vmul.f32 %v68, %v68
    %v71 = vld [vmem:[#allocation2] sm:$0xff]
    %v72 = vadd.f32 %v69, %v70
    %v73 = vadd.f32 %v71, %v72
    %74 = vst [vmem:[#allocation2] sm:$0xff] %v73
    // Predicated region
    $region22: #{tpu_custom_call.1} parent=1 // pred_check
      %p75 = pneg %p40
    $region23: #{tpu_custom_call.1} parent=1 // pred_check_branch
      %77 = sbr.rel (%p75) target = $region25
    $region24: #{tpu_custom_call.1} parent=1 // pred_region
      %v78 = vld [vmem:[#allocation2] sm:$0xff]
      %79 = vadd.xlane.f32.xlu0 %v78
      %v80 = vpop.xlane.xlu0 %79
      %v81 = vrot.slane %v80, 4
      %v82 = vadd.f32 %v80, %v81
      %v83 = vrot.slane %v82, 2
      %v84 = vadd.f32 %v82, %v83
      %v85 = vrot.slane %v84, 1
      %v86 = vadd.f32 %v84, %v85
      %s87 = vtos %v86
      %v88 = vrcp.pop 2048.0
      %s89 = vtos %v88
      %s90 = smul.f32 %s87, %s89
      %s91 = scalar_lea.smem [#allocation8], 0
      %92 = sst [smem:[%s91]] %s90
    $region25: #{tpu_custom_call.1} parent=1 // pred_fallthru
      _
    // Predicated region
    $region26: #{tpu_custom_call.1} parent=1 // pred_check
      _
    $region27: #{tpu_custom_call.1} parent=1 // pred_check_branch
      %94 = sbr.rel (0) target = $region29
    $region28: #{tpu_custom_call.1} parent=1 // pred_region
      %s96 = ssub.s32 16, 16
      %97 = vsyncadd [#allocation5], %s96
      %100 = dma.smem_to_hbm [#allocation8], 16, %s2, [#allocation5]
    $region29: #{tpu_custom_call.1} parent=1 // pred_fallthru
      _
    // Predicated region
    $region30: #{tpu_custom_call.1} parent=1 // pred_check
      _
    $region31: #{tpu_custom_call.1} parent=1 // pred_check_branch
      %102 = sbr.rel (0) target = $region33
    $region32: #{tpu_custom_call.1} parent=1 // pred_region
      %103 = dma.done [#allocation5], 16
    $region33: #{tpu_custom_call.1} parent=1 // pred_fallthru
      _
    %104 = sfence
    %105 = vsyncpa [#allocation4], 1
    %106 = vsyncpa [#allocation7], 1
    %107 = vsyncpa [#allocation5], 1

</llo_original>
